<compile_context>
chip_gen: v7x
topology: tpu7x:2x2x1
jax: 0.10.0
libtpu: 0.0.40
codegen_flags: <defaults>
</compile_context>

<pallas_src>
import jax
import jax.numpy as jnp
from jax.experimental import pallas as pl
from jax.experimental.pallas import tpu as pltpu  # noqa: F401

# ---- static config (consistent with the module) ----
B = 2          # batch
S = 8          # seq_len
D_MODEL = 32   # d_model
N_HEADS = 4    # n_heads
D_HEAD = 8     # d_head
D_QKV = N_HEADS * D_HEAD
SCALE = D_HEAD ** (-0.5)
NEG = -1e30    # "minus infinity" for off-diagonal (cross-head / cross-batch) blocks

# TODO(synk): attention dropout (nn.Dropout) is a no-op in eval mode; not implemented.


def attention_kernel(h_ref, wqkv_ref, wo_ref, bias_ref, mask_ref, out_ref):
    # h_ref:    (B*S, D_MODEL)
    # wqkv_ref: (D_MODEL, 3*D_QKV)       fused [Wq | Wk | Wv]
    # wo_ref:   (D_QKV, D_MODEL)
    # bias_ref: (B*H*S, B*H*S)           block-diagonal att_bias, NEG off-diagonal
    # mask_ref: (B*H*S, B*H*S)           block-diagonal mask (0 off-diagonal)
    hf = h_ref[...]

    # fused Q/K/V projection: one MXU pass
    qkv = jnp.dot(hf, wqkv_ref[...], preferred_element_type=jnp.float32)  # (B*S, 3*D_QKV)

    # stack heads (and batches) along sublanes: rows ordered (b, h, s)
    def stack_heads(mat):  # mat: (B*S, D_QKV) -> (B*H*S, D_HEAD)
        blocks = []
        for b in range(B):
            for hh in range(N_HEADS):
                blocks.append(mat[b * S:(b + 1) * S, hh * D_HEAD:(hh + 1) * D_HEAD])
        return jnp.concatenate(blocks, axis=0)

    q_st = stack_heads(qkv[:, 0:D_QKV])                 # (B*H*S, dh)
    k_st = stack_heads(qkv[:, D_QKV:2 * D_QKV])         # (B*H*S, dh)
    v_st = stack_heads(qkv[:, 2 * D_QKV:3 * D_QKV])     # (B*H*S, dh)

    # all (batch, head) score blocks in ONE matmul; off-diagonal blocks are garbage
    # but are driven to ~-1e30 by the pre-built block-diagonal bias.
    scores = jnp.dot(q_st, k_st.T, preferred_element_type=jnp.float32) * SCALE
    scores = scores + bias_ref[...]
    scores = jnp.where(mask_ref[...] != 0, jnp.float32(1e-4), scores)  # masked_fill

    # numerically-stable softmax over last dim (off-diagonal blocks -> exp == 0)
    m = jnp.max(scores, axis=-1, keepdims=True)
    e = jnp.exp(scores - m)
    p = e * pl.reciprocal(jnp.sum(e, axis=-1, keepdims=True), approx=False)

    # attention-weighted values for all (batch, head) blocks in ONE matmul
    ctx_st = jnp.dot(p, v_st, preferred_element_type=jnp.float32)      # (B*H*S, dh)

    # un-stack back to (B*S, H*dh) with columns ordered (head, d)
    rows = []
    for b in range(B):
        head_blocks = [ctx_st[(b * N_HEADS + hh) * S:(b * N_HEADS + hh + 1) * S, :]
                       for hh in range(N_HEADS)]
        rows.append(jnp.concatenate(head_blocks, axis=1))              # (S, H*dh)
    ctx = jnp.concatenate(rows, axis=0)                                # (B*S, H*dh)

    out_ref[...] = jnp.dot(ctx, wo_ref[...],
                           preferred_element_type=jnp.float32).astype(out_ref.dtype)


def attention_pallas(h, wq, wk, wv, wo, att_bias=None, mask=None):
    """h: (B,S,D); wq/wk/wv: (D, H*dh); wo: (H*dh, D); att_bias: (B,S,S,H); mask: (B,S,S)."""
    Bn, Sn, Dn = h.shape
    H = N_HEADS
    if att_bias is None:
        att_bias = jnp.zeros((Bn, Sn, Sn, H), jnp.float32)
    if mask is None:
        mask = jnp.zeros((Bn, Sn, Sn), jnp.float32)

    # ---- host-side layout plumbing (pure XLA, outside the kernel) ----
    wqkv = jnp.concatenate([wq, wk, wv], axis=1)                        # (D, 3*H*dh)

    # att_bias (B,S,S,H) -> (B,H,S,S), matching torch's permute(0,3,1,2)
    bias_bhss = att_bias.astype(jnp.float32).transpose(0, 3, 1, 2).reshape(Bn * H, Sn, Sn)
    mask_bhss = jnp.broadcast_to(mask[:, None].astype(jnp.float32),
                                 (Bn, H, Sn, Sn)).reshape(Bn * H, Sn, Sn)

    # embed block-diagonally: big[(g, s), (g', t)] = bias[g, s, t] if g == g' else NEG
    G = Bn * H
    eye = jnp.eye(G, dtype=jnp.bool_)[:, :, None, None]                 # (G,G,1,1)
    bias_big = jnp.where(eye, bias_bhss[:, None], jnp.float32(NEG))     # (G,G,S,S)
    bias_big = bias_big.transpose(0, 2, 1, 3).reshape(G * Sn, G * Sn)
    mask_big = jnp.where(eye, mask_bhss[:, None], jnp.float32(0.0))
    mask_big = mask_big.transpose(0, 2, 1, 3).reshape(G * Sn, G * Sn)

    h_flat = h.reshape(Bn * Sn, Dn)

    out_flat = pl.pallas_call(
        attention_kernel,
        out_shape=jax.ShapeDtypeStruct((Bn * Sn, Dn), jnp.float32),
    )(h_flat, wqkv, wo, bias_big, mask_big)

    return out_flat.reshape(Bn, Sn, Dn)


def attention_reference(h, wq, wk, wv, wo, att_bias, mask):
    """Pure-JAX reference mirroring the PyTorch forward."""
    Bn, Sn, _ = h.shape
    q = (h @ wq).reshape(Bn, Sn, N_HEADS, D_HEAD).transpose(0, 2, 1, 3)   # (B,H,S,dh)
    k = (h @ wk).reshape(Bn, Sn, N_HEADS, D_HEAD).transpose(0, 2, 3, 1)   # (B,H,dh,S)
    v = (h @ wv).reshape(Bn, Sn, N_HEADS, D_HEAD).transpose(0, 2, 1, 3)   # (B,H,S,dh)
    scores = jnp.einsum('bhsd,bhdt->bhst', q, k) * SCALE
    scores = scores + att_bias.transpose(0, 3, 1, 2)
    scores = jnp.where(mask[:, None] != 0, jnp.float32(1e-4), scores)
    w = jax.nn.softmax(scores, axis=-1)
    out = jnp.einsum('bhst,bhtd->bhsd', w, v)
    out = out.transpose(0, 2, 1, 3).reshape(Bn, Sn, D_QKV)
    return out @ wo


if __name__ == "__main__":
    key = jax.random.PRNGKey(0)
    k1, k2, k3, k4, k5, k6, k7, _ = jax.random.split(key, 8)

    # deterministic parameter init (Linear weights, stored as (in, out))
    wq = jax.random.normal(k1, (D_MODEL, D_QKV), jnp.float32) * 0.05
    wk = jax.random.normal(k2, (D_MODEL, D_QKV), jnp.float32) * 0.05
    wv = jax.random.normal(k3, (D_MODEL, D_QKV), jnp.float32) * 0.05
    wo = jax.random.normal(k4, (D_QKV, D_MODEL), jnp.float32) * 0.05

    # inputs
    h = jax.random.normal(k5, (B, S, D_MODEL), jnp.float32)
    att_bias = jax.random.normal(k6, (B, S, S, N_HEADS), jnp.float32) * 0.1
    mask = (jax.random.uniform(k7, (B, S, S)) < 0.2).astype(jnp.float32)

    out = attention_pallas(h, wq, wk, wv, wo, att_bias, mask)
    out = jax.block_until_ready(out)

    ref = attention_reference(h, wq, wk, wv, wo, att_bias, mask)
    assert out.shape == (B, S, D_MODEL)
    assert jnp.allclose(out, ref, atol=1e-4, rtol=1e-4), "mismatch vs reference"

    print("KERNEL_OK")
</pallas_src>

<mosaic_0001>
module attributes {stable_mosaic.version = 11 : i64} {
  func.func @attention_kernel(%arg0: memref<16x32xf32, #tpu.memory_space<vmem>>, %arg1: memref<32x96xf32, #tpu.memory_space<vmem>>, %arg2: memref<32x32xf32, #tpu.memory_space<vmem>>, %arg3: memref<64x64xf32, #tpu.memory_space<vmem>>, %arg4: memref<64x64xf32, #tpu.memory_space<vmem>>, %arg5: memref<16x32xf32, #tpu.memory_space<vmem>>) attributes {dimension_semantics = [], scalar_prefetch = 0 : i64, scratch_operands = 0 : i64, tpu.core_type = #tpu.core_type<tc>} {
    %c0 = arith.constant 0 : index
    %c0_0 = arith.constant 0 : index
    %0 = vector.load %arg0[%c0, %c0_0] : memref<16x32xf32, #tpu.memory_space<vmem>>, vector<16x32xf32>
    %c0_1 = arith.constant 0 : index
    %c0_2 = arith.constant 0 : index
    %1 = vector.load %arg1[%c0_1, %c0_2] : memref<32x96xf32, #tpu.memory_space<vmem>>, vector<32x96xf32>
    %cst = arith.constant dense<0.000000e+00> : vector<16x96xf32>
    %2 = tpu.matmul %0, %1, %cst {dimension_numbers = #tpu.dot_dimension_numbers<[1], [0], [0], [1], [0, 0, 1, 1], [], []>} : vector<16x32xf32>, vector<32x96xf32>, vector<16x96xf32> -> vector<16x96xf32>
    %3 = vector.extract_strided_slice %2 {offsets = [0, 0], sizes = [16, 32], strides = [1, 1]} : vector<16x96xf32> to vector<16x32xf32>
    %4 = vector.extract_strided_slice %3 {offsets = [0, 0], sizes = [8, 8], strides = [1, 1]} : vector<16x32xf32> to vector<8x8xf32>
    %5 = vector.extract_strided_slice %3 {offsets = [0, 8], sizes = [8, 8], strides = [1, 1]} : vector<16x32xf32> to vector<8x8xf32>
    %6 = vector.extract_strided_slice %3 {offsets = [0, 16], sizes = [8, 8], strides = [1, 1]} : vector<16x32xf32> to vector<8x8xf32>
    %7 = vector.extract_strided_slice %3 {offsets = [0, 24], sizes = [8, 8], strides = [1, 1]} : vector<16x32xf32> to vector<8x8xf32>
    %8 = vector.extract_strided_slice %3 {offsets = [8, 0], sizes = [8, 8], strides = [1, 1]} : vector<16x32xf32> to vector<8x8xf32>
    %9 = vector.extract_strided_slice %3 {offsets = [8, 8], sizes = [8, 8], strides = [1, 1]} : vector<16x32xf32> to vector<8x8xf32>
    %10 = vector.extract_strided_slice %3 {offsets = [8, 16], sizes = [8, 8], strides = [1, 1]} : vector<16x32xf32> to vector<8x8xf32>
    %11 = vector.extract_strided_slice %3 {offsets = [8, 24], sizes = [8, 8], strides = [1, 1]} : vector<16x32xf32> to vector<8x8xf32>
    %12 = tpu.concatenate %4, %5, %6, %7, %8, %9, %10, %11 in 0 : vector<8x8xf32>, vector<8x8xf32>, vector<8x8xf32>, vector<8x8xf32>, vector<8x8xf32>, vector<8x8xf32>, vector<8x8xf32>, vector<8x8xf32> -> vector<64x8xf32>
    %13 = vector.extract_strided_slice %2 {offsets = [0, 32], sizes = [16, 32], strides = [1, 1]} : vector<16x96xf32> to vector<16x32xf32>
    %14 = vector.extract_strided_slice %13 {offsets = [0, 0], sizes = [8, 8], strides = [1, 1]} : vector<16x32xf32> to vector<8x8xf32>
    %15 = vector.extract_strided_slice %13 {offsets = [0, 8], sizes = [8, 8], strides = [1, 1]} : vector<16x32xf32> to vector<8x8xf32>
    %16 = vector.extract_strided_slice %13 {offsets = [0, 16], sizes = [8, 8], strides = [1, 1]} : vector<16x32xf32> to vector<8x8xf32>
    %17 = vector.extract_strided_slice %13 {offsets = [0, 24], sizes = [8, 8], strides = [1, 1]} : vector<16x32xf32> to vector<8x8xf32>
    %18 = vector.extract_strided_slice %13 {offsets = [8, 0], sizes = [8, 8], strides = [1, 1]} : vector<16x32xf32> to vector<8x8xf32>
    %19 = vector.extract_strided_slice %13 {offsets = [8, 8], sizes = [8, 8], strides = [1, 1]} : vector<16x32xf32> to vector<8x8xf32>
    %20 = vector.extract_strided_slice %13 {offsets = [8, 16], sizes = [8, 8], strides = [1, 1]} : vector<16x32xf32> to vector<8x8xf32>
    %21 = vector.extract_strided_slice %13 {offsets = [8, 24], sizes = [8, 8], strides = [1, 1]} : vector<16x32xf32> to vector<8x8xf32>
    %22 = tpu.concatenate %14, %15, %16, %17, %18, %19, %20, %21 in 0 : vector<8x8xf32>, vector<8x8xf32>, vector<8x8xf32>, vector<8x8xf32>, vector<8x8xf32>, vector<8x8xf32>, vector<8x8xf32>, vector<8x8xf32> -> vector<64x8xf32>
    %23 = vector.extract_strided_slice %2 {offsets = [0, 64], sizes = [16, 32], strides = [1, 1]} : vector<16x96xf32> to vector<16x32xf32>
    %24 = vector.extract_strided_slice %23 {offsets = [0, 0], sizes = [8, 8], strides = [1, 1]} : vector<16x32xf32> to vector<8x8xf32>
    %25 = vector.extract_strided_slice %23 {offsets = [0, 8], sizes = [8, 8], strides = [1, 1]} : vector<16x32xf32> to vector<8x8xf32>
    %26 = vector.extract_strided_slice %23 {offsets = [0, 16], sizes = [8, 8], strides = [1, 1]} : vector<16x32xf32> to vector<8x8xf32>
    %27 = vector.extract_strided_slice %23 {offsets = [0, 24], sizes = [8, 8], strides = [1, 1]} : vector<16x32xf32> to vector<8x8xf32>
    %28 = vector.extract_strided_slice %23 {offsets = [8, 0], sizes = [8, 8], strides = [1, 1]} : vector<16x32xf32> to vector<8x8xf32>
    %29 = vector.extract_strided_slice %23 {offsets = [8, 8], sizes = [8, 8], strides = [1, 1]} : vector<16x32xf32> to vector<8x8xf32>
    %30 = vector.extract_strided_slice %23 {offsets = [8, 16], sizes = [8, 8], strides = [1, 1]} : vector<16x32xf32> to vector<8x8xf32>
    %31 = vector.extract_strided_slice %23 {offsets = [8, 24], sizes = [8, 8], strides = [1, 1]} : vector<16x32xf32> to vector<8x8xf32>
    %32 = tpu.concatenate %24, %25, %26, %27, %28, %29, %30, %31 in 0 : vector<8x8xf32>, vector<8x8xf32>, vector<8x8xf32>, vector<8x8xf32>, vector<8x8xf32>, vector<8x8xf32>, vector<8x8xf32>, vector<8x8xf32> -> vector<64x8xf32>
    %33 = tpu.transpose %22, [1, 0] : vector<64x8xf32> -> vector<8x64xf32>
    %cst_3 = arith.constant dense<0.000000e+00> : vector<64x64xf32>
    %34 = tpu.matmul %12, %33, %cst_3 {dimension_numbers = #tpu.dot_dimension_numbers<[1], [0], [0], [1], [0, 0, 1, 1], [], []>} : vector<64x8xf32>, vector<8x64xf32>, vector<64x64xf32> -> vector<64x64xf32>
    %cst_4 = arith.constant 0.353553385 : f32
    %35 = vector.broadcast %cst_4 : f32 to vector<64x64xf32>
    %36 = arith.mulf %34, %35 : vector<64x64xf32>
    %c0_5 = arith.constant 0 : index
    %c0_6 = arith.constant 0 : index
    %37 = vector.load %arg3[%c0_5, %c0_6] : memref<64x64xf32, #tpu.memory_space<vmem>>, vector<64x64xf32>
    %38 = arith.addf %36, %37 : vector<64x64xf32>
    %c0_7 = arith.constant 0 : index
    %c0_8 = arith.constant 0 : index
    %39 = vector.load %arg4[%c0_7, %c0_8] : memref<64x64xf32, #tpu.memory_space<vmem>>, vector<64x64xf32>
    %cst_9 = arith.constant 0.000000e+00 : f32
    %40 = vector.broadcast %cst_9 : f32 to vector<64x64xf32>
    %41 = arith.cmpf one, %39, %40 : vector<64x64xf32>
    %cst_10 = arith.constant 9.99999974E-5 : f32
    %42 = vector.broadcast %cst_10 : f32 to vector<64x64xf32>
    %43 = arith.select %41, %42, %38 : vector<64x64xi1>, vector<64x64xf32>
    %cst_11 = arith.constant dense<0xFF800000> : vector<64xf32>
    %44 = vector.multi_reduction <maximumf>, %43, %cst_11 [1] : vector<64x64xf32> to vector<64xf32>
    %45 = vector.shape_cast %44 : vector<64xf32> to vector<64x1xf32>
    %46 = vector.broadcast %45 : vector<64x1xf32> to vector<64x64xf32>
    %47 = arith.subf %43, %46 : vector<64x64xf32>
    %48 = math.exp %47 : vector<64x64xf32>
    %cst_12 = arith.constant dense<0.000000e+00> : vector<64xf32>
    %49 = vector.multi_reduction <add>, %48, %cst_12 [1] : vector<64x64xf32> to vector<64xf32>
    %50 = vector.shape_cast %49 : vector<64xf32> to vector<64x1xf32>
    %51 = tpu.reciprocal %50 : vector<64x1xf32> -> vector<64x1xf32>
    %52 = vector.broadcast %51 : vector<64x1xf32> to vector<64x64xf32>
    %53 = arith.mulf %48, %52 : vector<64x64xf32>
    %cst_13 = arith.constant dense<0.000000e+00> : vector<64x8xf32>
    %54 = tpu.matmul %53, %32, %cst_13 {dimension_numbers = #tpu.dot_dimension_numbers<[1], [0], [0], [1], [0, 0, 1, 1], [], []>} : vector<64x64xf32>, vector<64x8xf32>, vector<64x8xf32> -> vector<64x8xf32>
    %55 = vector.extract_strided_slice %54 {offsets = [0, 0], sizes = [8, 8], strides = [1, 1]} : vector<64x8xf32> to vector<8x8xf32>
    %56 = vector.extract_strided_slice %54 {offsets = [8, 0], sizes = [8, 8], strides = [1, 1]} : vector<64x8xf32> to vector<8x8xf32>
    %57 = vector.extract_strided_slice %54 {offsets = [16, 0], sizes = [8, 8], strides = [1, 1]} : vector<64x8xf32> to vector<8x8xf32>
    %58 = vector.extract_strided_slice %54 {offsets = [24, 0], sizes = [8, 8], strides = [1, 1]} : vector<64x8xf32> to vector<8x8xf32>
    %59 = tpu.concatenate %55, %56, %57, %58 in 1 : vector<8x8xf32>, vector<8x8xf32>, vector<8x8xf32>, vector<8x8xf32> -> vector<8x32xf32>
    %60 = vector.extract_strided_slice %54 {offsets = [32, 0], sizes = [8, 8], strides = [1, 1]} : vector<64x8xf32> to vector<8x8xf32>
    %61 = vector.extract_strided_slice %54 {offsets = [40, 0], sizes = [8, 8], strides = [1, 1]} : vector<64x8xf32> to vector<8x8xf32>
    %62 = vector.extract_strided_slice %54 {offsets = [48, 0], sizes = [8, 8], strides = [1, 1]} : vector<64x8xf32> to vector<8x8xf32>
    %63 = vector.extract_strided_slice %54 {offsets = [56, 0], sizes = [8, 8], strides = [1, 1]} : vector<64x8xf32> to vector<8x8xf32>
    %64 = tpu.concatenate %60, %61, %62, %63 in 1 : vector<8x8xf32>, vector<8x8xf32>, vector<8x8xf32>, vector<8x8xf32> -> vector<8x32xf32>
    %65 = tpu.concatenate %59, %64 in 0 : vector<8x32xf32>, vector<8x32xf32> -> vector<16x32xf32>
    %c0_14 = arith.constant 0 : index
    %c0_15 = arith.constant 0 : index
    %66 = vector.load %arg2[%c0_14, %c0_15] : memref<32x32xf32, #tpu.memory_space<vmem>>, vector<32x32xf32>
    %cst_16 = arith.constant dense<0.000000e+00> : vector<16x32xf32>
    %67 = tpu.matmul %65, %66, %cst_16 {dimension_numbers = #tpu.dot_dimension_numbers<[1], [0], [0], [1], [0, 0, 1, 1], [], []>} : vector<16x32xf32>, vector<32x32xf32>, vector<16x32xf32> -> vector<16x32xf32>
    %c0_17 = arith.constant 0 : index
    %c0_18 = arith.constant 0 : index
    %68 = vector.load %arg5[%c0_17, %c0_18] : memref<16x32xf32, #tpu.memory_space<vmem>>, vector<16x32xf32>
    tpu.vector_store %arg5[%c0_17, %c0_18], %67 {strides = array<i32>} : memref<16x32xf32, #tpu.memory_space<vmem>>, vector<16x32xf32>,
    return
  }
}

</mosaic_0001>

<llo_original>
// kernel: tpu_custom_call.1
$region0: #{tpu_custom_call.1}
  #allocation0 [shape = 'u32[]', space=smem, size = 0x4, offset = 0x4, fixed_abs, tag = 'smem constant byte address 0x4 - core index']
  #allocation1 [shape = 'u32[144,128]{1,0:T(1,128)}', space=vmem, size = 0x12000, scoped, tag = 'internal scratch']
  %s0 = inlined_call_operand.hbm [shape: f32[16,32], index: 0, kind: input, shape index: {}]
  %s1 = inlined_call_operand.hbm [shape: f32[32,96], index: 1, kind: input, shape index: {}]
  %s2 = inlined_call_operand.hbm [shape: f32[32,32], index: 2, kind: input, shape index: {}]
  %s3 = inlined_call_operand.hbm [shape: f32[64,64], index: 3, kind: input, shape index: {}]
  %s4 = inlined_call_operand.hbm [shape: f32[64,64], index: 4, kind: input, shape index: {}]
  %s5 = inlined_call_operand.hbm [shape: f32[16,32], index: 5, kind: output, shape index: {}]
  %s6 = sld [smem:[#allocation0]]
  $region50: #{tpu_custom_call.1} parent=0
    _
  %s8 = ssub.s32 1, %s6
  %s9 = scalar_select 0, %s8, %s6
  $region1: #{tpu_custom_call.1} parent=0
    #allocation2 [shape = 'u8[8192]{0}', space=vmem, size = 0x2000, scoped, tag = 'input window, operand 0, single buffered']
    #allocation3 [shape = 's32[1]{0}', space=sflag, size = 0x4, scoped, tag = 'scoped memory for tpu_custom_call.1']
    #allocation4 [shape = 's32[1]{0}', space=sflag, size = 0x4, scoped, tag = 'scoped memory for tpu_custom_call.1']
    #allocation5 [shape = 'u8[16384]{0}', space=vmem, size = 0x4000, scoped, tag = 'input window, operand 1, single buffered']
    #allocation6 [shape = 's32[1]{0}', space=sflag, size = 0x4, scoped, tag = 'scoped memory for tpu_custom_call.1']
    #allocation7 [shape = 'u8[16384]{0}', space=vmem, size = 0x4000, scoped, tag = 'input window, operand 2, single buffered']
    #allocation8 [shape = 'u8[32768]{0}', space=vmem, size = 0x8000, scoped, tag = 'input window, operand 3, single buffered']
    #allocation9 [shape = 's32[1]{0}', space=sflag, size = 0x4, scoped, tag = 'scoped memory for tpu_custom_call.1']
    #allocation10 [shape = 'u8[32768]{0}', space=vmem, size = 0x8000, scoped, tag = 'input window, operand 4, single buffered']
    #allocation11 [shape = 'u8[8192]{0}', space=vmem, size = 0x2000, scoped, tag = 'output window, operand 0, single buffered']
    %10 = vsyncpa [#allocation3], 0
    %11 = vsyncpa [#allocation6], 0
    %12 = vsyncpa [#allocation9], 0
    %13 = vsyncpa [#allocation4], 0
    // Predicated region
    $region2: #{tpu_custom_call.1} parent=1 // pred_check
      _
    $region3: #{tpu_custom_call.1} parent=1 // pred_check_branch
      %15 = sbr.rel (0) target = $region5
    $region4: #{tpu_custom_call.1} parent=1 // pred_region
      %s17 = ssub.s32 256, 256
      %18 = vsyncadd [#allocation3], %s17
      %s19 = sshll.u32 [#allocation2], 4
      %s20 = int_to_ptr.vmem [resolvable:$true] %s19
      %25 = dma.hbm_to_vmem [thread:$0]  %s0, 256, %s20, [#allocation3], 128, 128, 8
    $region5: #{tpu_custom_call.1} parent=1 // pred_fallthru
      _
    // Predicated region
    $region6: #{tpu_custom_call.1} parent=1 // pred_check
      _
    $region7: #{tpu_custom_call.1} parent=1 // pred_check_branch
      %27 = sbr.rel (0) target = $region9
    $region8: #{tpu_custom_call.1} parent=1 // pred_region
      %s29 = ssub.s32 512, 512
      %30 = vsyncadd [#allocation6], %s29
      %s31 = sshll.u32 [#allocation5], 4
      %s32 = int_to_ptr.vmem [resolvable:$true] %s31
      %37 = dma.hbm_to_vmem [thread:$0]  %s1, 512, %s32, [#allocation6], 128, 128, 8
    $region9: #{tpu_custom_call.1} parent=1 // pred_fallthru
      _
    // Predicated region
    $region10: #{tpu_custom_call.1} parent=1 // pred_check
      _
    $region11: #{tpu_custom_call.1} parent=1 // pred_check_branch
      %39 = sbr.rel (0) target = $region13
    $region12: #{tpu_custom_call.1} parent=1 // pred_region
      %s41 = ssub.s32 512, 512
      %42 = vsyncadd [#allocation6], %s41
      %s43 = sshll.u32 [#allocation7], 4
      %s44 = int_to_ptr.vmem [resolvable:$true] %s43
      %49 = dma.hbm_to_vmem [thread:$0]  %s2, 512, %s44, [#allocation6], 128, 128, 8
    $region13: #{tpu_custom_call.1} parent=1 // pred_fallthru
      _
    // Predicated region
    $region14: #{tpu_custom_call.1} parent=1 // pred_check
      _
    $region15: #{tpu_custom_call.1} parent=1 // pred_check_branch
      %51 = sbr.rel (0) target = $region17
    $region16: #{tpu_custom_call.1} parent=1 // pred_region
      %s53 = ssub.s32 1024, 1024
      %54 = vsyncadd [#allocation9], %s53
      %s55 = sshll.u32 [#allocation8], 4
      %s56 = int_to_ptr.vmem [resolvable:$true] %s55
      %61 = dma.hbm_to_vmem [thread:$0]  %s3, 1024, %s56, [#allocation9], 128, 128, 8
    $region17: #{tpu_custom_call.1} parent=1 // pred_fallthru
      _
    // Predicated region
    $region18: #{tpu_custom_call.1} parent=1 // pred_check
      _
    $region19: #{tpu_custom_call.1} parent=1 // pred_check_branch
      %63 = sbr.rel (0) target = $region21
    $region20: #{tpu_custom_call.1} parent=1 // pred_region
      %s65 = ssub.s32 1024, 1024
      %66 = vsyncadd [#allocation9], %s65
      %s67 = sshll.u32 [#allocation10], 4
      %s68 = int_to_ptr.vmem [resolvable:$true] %s67
      %73 = dma.hbm_to_vmem [thread:$0]  %s4, 1024, %s68, [#allocation9], 128, 128, 8
    $region21: #{tpu_custom_call.1} parent=1 // pred_fallthru
      _
    // Predicated region
    $region22: #{tpu_custom_call.1} parent=1 // pred_check
      _
    $region23: #{tpu_custom_call.1} parent=1 // pred_check_branch
      %75 = sbr.rel (0) target = $region25
    $region24: #{tpu_custom_call.1} parent=1 // pred_region
      %76 = dma.done [#allocation3], 256
    $region25: #{tpu_custom_call.1} parent=1 // pred_fallthru
      _
    // Predicated region
    $region26: #{tpu_custom_call.1} parent=1 // pred_check
      _
    $region27: #{tpu_custom_call.1} parent=1 // pred_check_branch
      %78 = sbr.rel (0) target = $region29
    $region28: #{tpu_custom_call.1} parent=1 // pred_region
      %79 = dma.done [#allocation6], 512
    $region29: #{tpu_custom_call.1} parent=1 // pred_fallthru
      _
    // Predicated region
    $region30: #{tpu_custom_call.1} parent=1 // pred_check
      _
    $region31: #{tpu_custom_call.1} parent=1 // pred_check_branch
      %81 = sbr.rel (0) target = $region33
    $region32: #{tpu_custom_call.1} parent=1 // pred_region
      %82 = dma.done [#allocation6], 512
    $region33: #{tpu_custom_call.1} parent=1 // pred_fallthru
      _
    // Predicated region
    $region34: #{tpu_custom_call.1} parent=1 // pred_check
      _
    $region35: #{tpu_custom_call.1} parent=1 // pred_check_branch
      %84 = sbr.rel (0) target = $region37
    $region36: #{tpu_custom_call.1} parent=1 // pred_region
      %85 = dma.done [#allocation9], 1024
    $region37: #{tpu_custom_call.1} parent=1 // pred_fallthru
      _
    // Predicated region
    $region38: #{tpu_custom_call.1} parent=1 // pred_check
      _
    $region39: #{tpu_custom_call.1} parent=1 // pred_check_branch
      %87 = sbr.rel (0) target = $region41
    $region40: #{tpu_custom_call.1} parent=1 // pred_region
      %88 = dma.done [#allocation9], 1024
    $region41: #{tpu_custom_call.1} parent=1 // pred_fallthru
      _
    %v89 = vld [vmem:[#allocation2] sm:$0xff]
    %v90 = vld [vmem:[#allocation2 + $0x8] sm:$0xff]
    %v91 = vld [vmem:[#allocation5] sm:$0xff]
    %v92 = vld [vmem:[#allocation5 + $0x8] sm:$0xff]
    %v93 = vld [vmem:[#allocation5 + $0x10] sm:$0xff]
    %v94 = vld [vmem:[#allocation5 + $0x18] sm:$0xff]
    %vm95 = vcmask 261120
    %v97 = vsel %vm95, %v89, 0
    %v100 = vsel %vm95, %v90, 0
    %102 = vmatprep.subr.mxu0 0.0
    %103 = vmatpush1.msra.mxu0 %v91
    %104 = vmatprep.subr.mxu0 0.0
    %105 = vmatpush1.msra.mxu0 %v92
    %106 = vmatprep.subr.mxu0 0.0
    %107 = vmatpush1.msra.mxu0 %v93
    %108 = vmatprep.subr.mxu0 0.0
    %109 = vmatpush1.msra.mxu0 %v94
    %110 = vmatprep.subr.mxu0 0.0
    %111 = vmatpush1.msra.mxu0 0.0
    %112 = vmatprep.subr.mxu0 0.0
    %113 = vmatpush1.msra.mxu0 0.0
    %114 = vmatprep.subr.mxu0 0.0
    %115 = vmatpush1.msra.mxu0 0.0
    %116 = vmatprep.subr.mxu0 0.0
    %117 = vmatpush1.msra.mxu0 0.0
    %118 = vmatprep.subr.mxu0 0.0
    %119 = vmatpush1.msra.mxu0 0.0
    %120 = vmatprep.subr.mxu0 0.0
    %121 = vmatpush1.msra.mxu0 0.0
    %122 = vmatprep.subr.mxu0 0.0
    %123 = vmatpush1.msra.mxu0 0.0
    %124 = vmatprep.subr.mxu0 0.0
    %125 = vmatpush1.msra.mxu0 0.0
    %126 = vmatprep.subr.mxu0 0.0
    %127 = vmatpush1.msra.mxu0 0.0
    %128 = vmatprep.subr.mxu0 0.0
    %129 = vmatpush1.msra.mxu0 0.0
    %130 = vmatprep.subr.mxu0 0.0
    %131 = vmatpush1.msra.mxu0 0.0
    %132 = vmatprep.subr.mxu0 0.0
    %133 = vmatpush1.msra.mxu0 0.0
    %134 = vmatprep.subr.mxu0 0.0
    %135 = vmatpush1.msra.mxu0 0.0
    %136 = vmatprep.subr.mxu0 0.0
    %137 = vmatpush1.msra.mxu0 0.0
    %138 = vmatprep.subr.mxu0 0.0
    %139 = vmatpush1.msra.mxu0 0.0
    %140 = vmatprep.subr.mxu0 0.0
    %141 = vmatpush1.msra.mxu0 0.0
    %142 = vmatprep.subr.mxu0 0.0
    %143 = vmatpush1.msra.mxu0 0.0
    %144 = vmatprep.subr.mxu0 0.0
    %145 = vmatpush1.msra.mxu0 0.0
    %146 = vmatprep.subr.mxu0 0.0
    %147 = vmatpush1.msra.mxu0 0.0
    %148 = vmatprep.subr.mxu0 0.0
    %149 = vmatpush1.msra.mxu0 0.0
    %150 = vmatprep.subr.mxu0 0.0
    %151 = vmatpush1.msra.mxu0 0.0
    %152 = vmatprep.subr.mxu0 0.0
    %153 = vmatpush1.msra.mxu0 0.0
    %154 = vmatprep.subr.mxu0 0.0
    %155 = vmatpush1.msra.mxu0 0.0
    %156 = vmatprep.subr.mxu0 0.0
    %157 = vmatpush1.msra.mxu0 0.0
    %158 = vmatprep.subr.mxu0 0.0
    %159 = vmatpush1.msra.mxu0 0.0
    %160 = vmatprep.subr.mxu0 0.0
    %161 = vmatpush1.msra.mxu0 0.0
    %162 = vmatprep.subr.mxu0 0.0
    %163 = vmatpush1.msra.mxu0 0.0
    %164 = vmatprep.subr.mxu0 0.0
    %165 = vmatpush1.msra.mxu0 0.0
    %166 = vmatprep.mubr.f32.mxu0 0.0
    %167 = vmatmul.mubr.f32.gmra.mrb[0].mxu0 %v97
    %v168 = vpop.f32.mrb[0].mxu0
    %v169 = vadd.f32 0.0, %v168
    %v170 = vpop.f32.mrb[0].mxu0
    %171 = vmatprep.mubr.f32.mxu0 0.0
    %172 = vmatmul.mubr.f32.gmra.mrb[0].mxu0 %v100
    %v173 = vpop.f32.mrb[0].mxu0
    %v174 = vadd.f32 0.0, %v173
    %v175 = vpop.f32.mrb[0].mxu0
    %176 = vdwg.mxu0
    %178 = vrot.lane.b32.xlu0 %v169, 120
    %v179 = vpop.permute.xlu0 %178
    %180 = vrot.lane.b32.xlu0 %v169, 112
    %v181 = vpop.permute.xlu0 %180
    %182 = vrot.lane.b32.xlu0 %v169, 104
    %v183 = vpop.permute.xlu0 %182
    %185 = vrot.lane.b32.xlu0 %v174, 120
    %v186 = vpop.permute.xlu0 %185
    %187 = vrot.lane.b32.xlu0 %v174, 112
    %v188 = vpop.permute.xlu0 %187
    %189 = vrot.lane.b32.xlu0 %v174, 104
    %v190 = vpop.permute.xlu0 %189
    %191 = vrot.lane.b32.xlu0 %v169, 96
    %v192 = vpop.permute.xlu0 %191
    %193 = vrot.lane.b32.xlu0 %v179, 96
    %v194 = vpop.permute.xlu0 %193
    %195 = vrot.lane.b32.xlu0 %v181, 96
    %v196 = vpop.permute.xlu0 %195
    %197 = vrot.lane.b32.xlu0 %v183, 96
    %v198 = vpop.permute.xlu0 %197
    %199 = vrot.lane.b32.xlu0 %v174, 96
    %v200 = vpop.permute.xlu0 %199
    %201 = vrot.lane.b32.xlu0 %v186, 96
    %v202 = vpop.permute.xlu0 %201
    %203 = vrot.lane.b32.xlu0 %v188, 96
    %v204 = vpop.permute.xlu0 %203
    %205 = vrot.lane.b32.xlu0 %v190, 96
    %v206 = vpop.permute.xlu0 %205
    %vm207 = vcmask 64512
    %v208 = vsel %vm207, %v169, 0
    %v210 = vsel %vm207, %v179, 0
    %v212 = vsel %vm207, %v181, 0
    %v214 = vsel %vm207, %v183, 0
    %v216 = vsel %vm207, %v174, 0
    %v218 = vsel %vm207, %v186, 0
    %v220 = vsel %vm207, %v188, 0
    %v222 = vsel %vm207, %v190, 0
    %v224 = vsel %vm207, %v192, 0
    %v226 = vsel %vm207, %v194, 0
    %v228 = vsel %vm207, %v196, 0
    %v230 = vsel %vm207, %v198, 0
    %v232 = vsel %vm207, %v200, 0
    %v234 = vsel %vm207, %v202, 0
    %v236 = vsel %vm207, %v204, 0
    %v238 = vsel %vm207, %v206, 0
    %240 = vmatprep.subr.mxu0 0.0
    %241 = vmatpush1.xpose.msra.mxu0 %v224
    %242 = vmatprep.subr.mxu0 0.0
    %243 = vmatpush1.xpose.msra.mxu0 %v226
    %244 = vmatprep.subr.mxu0 0.0
    %245 = vmatpush1.xpose.msra.mxu0 %v228
    %246 = vmatprep.subr.mxu0 0.0
    %247 = vmatpush1.xpose.msra.mxu0 %v230
    %248 = vmatprep.subr.mxu0 0.0
    %249 = vmatpush1.xpose.msra.mxu0 %v232
    %250 = vmatprep.subr.mxu0 0.0
    %251 = vmatpush1.xpose.msra.mxu0 %v234
    %252 = vmatprep.subr.mxu0 0.0
    %253 = vmatpush1.xpose.msra.mxu0 %v236
    %254 = vmatprep.subr.mxu0 0.0
    %255 = vmatpush1.xpose.msra.mxu0 %v238
    %256 = vmatprep.subr.mxu0 0.0
    %257 = vmatpush1.xpose.msra.mxu0 0.0
    %258 = vmatprep.subr.mxu0 0.0
    %259 = vmatpush1.xpose.msra.mxu0 0.0
    %260 = vmatprep.subr.mxu0 0.0
    %261 = vmatpush1.xpose.msra.mxu0 0.0
    %262 = vmatprep.subr.mxu0 0.0
    %263 = vmatpush1.xpose.msra.mxu0 0.0
    %264 = vmatprep.subr.mxu0 0.0
    %265 = vmatpush1.xpose.msra.mxu0 0.0
    %266 = vmatprep.subr.mxu0 0.0
    %267 = vmatpush1.xpose.msra.mxu0 0.0
    %268 = vmatprep.subr.mxu0 0.0
    %269 = vmatpush1.xpose.msra.mxu0 0.0
    %270 = vmatprep.subr.mxu0 0.0
    %271 = vmatpush1.xpose.msra.mxu0 0.0
    %272 = vmatprep.subr.mxu0 0.0
    %273 = vmatpush1.xpose.msra.mxu0 0.0
    %274 = vmatprep.subr.mxu0 0.0
    %275 = vmatpush1.xpose.msra.mxu0 0.0
    %276 = vmatprep.subr.mxu0 0.0
    %277 = vmatpush1.xpose.msra.mxu0 0.0
    %278 = vmatprep.subr.mxu0 0.0
    %279 = vmatpush1.xpose.msra.mxu0 0.0
    %280 = vmatprep.subr.mxu0 0.0
    %281 = vmatpush1.xpose.msra.mxu0 0.0
    %282 = vmatprep.subr.mxu0 0.0
    %283 = vmatpush1.xpose.msra.mxu0 0.0
    %284 = vmatprep.subr.mxu0 0.0
    %285 = vmatpush1.xpose.msra.mxu0 0.0
    %286 = vmatprep.subr.mxu0 0.0
    %287 = vmatpush1.xpose.msra.mxu0 0.0
    %288 = vmatprep.subr.mxu0 0.0
    %289 = vmatpush1.xpose.msra.mxu0 0.0
    %290 = vmatprep.subr.mxu0 0.0
    %291 = vmatpush1.xpose.msra.mxu0 0.0
    %292 = vmatprep.subr.mxu0 0.0
    %293 = vmatpush1.xpose.msra.mxu0 0.0
    %294 = vmatprep.subr.mxu0 0.0
    %295 = vmatpush1.xpose.msra.mxu0 0.0
    %296 = vmatprep.subr.mxu0 0.0
    %297 = vmatpush1.xpose.msra.mxu0 0.0
    %298 = vmatprep.subr.mxu0 0.0
    %299 = vmatpush1.xpose.msra.mxu0 0.0
    %300 = vmatprep.subr.mxu0 0.0
    %301 = vmatpush1.xpose.msra.mxu0 0.0
    %302 = vmatprep.subr.mxu0 0.0
    %303 = vmatpush1.xpose.msra.mxu0 0.0
    %304 = vmatprep.mubr.f32.mxu0 0.0
    %305 = vmatmul.mubr.f32.gmra.mrb[0].mxu0 %v208
    %v306 = vpop.f32.mrb[0].mxu0
    %v307 = vadd.f32 0.0, %v306
    %v308 = vpop.f32.mrb[0].mxu0
    %309 = vmatprep.mubr.f32.mxu0 0.0
    %310 = vmatmul.mubr.f32.gmra.mrb[0].mxu0 %v210
    %v311 = vpop.f32.mrb[0].mxu0
    %v312 = vadd.f32 0.0, %v311
    %v313 = vpop.f32.mrb[0].mxu0
    %314 = vmatprep.mubr.f32.mxu0 0.0
    %315 = vmatmul.mubr.f32.gmra.mrb[0].mxu0 %v212
    %v316 = vpop.f32.mrb[0].mxu0
    %v317 = vadd.f32 0.0, %v316
    %v318 = vpop.f32.mrb[0].mxu0
    %319 = vmatprep.mubr.f32.mxu0 0.0
    %320 = vmatmul.mubr.f32.gmra.mrb[0].mxu0 %v214
    %v321 = vpop.f32.mrb[0].mxu0
    %v322 = vadd.f32 0.0, %v321
    %v323 = vpop.f32.mrb[0].mxu0
    %324 = vmatprep.mubr.f32.mxu0 0.0
    %325 = vmatmul.mubr.f32.gmra.mrb[0].mxu0 %v216
    %v326 = vpop.f32.mrb[0].mxu0
    %v327 = vadd.f32 0.0, %v326
    %v328 = vpop.f32.mrb[0].mxu0
    %329 = vmatprep.mubr.f32.mxu0 0.0
    %330 = vmatmul.mubr.f32.gmra.mrb[0].mxu0 %v218
    %v331 = vpop.f32.mrb[0].mxu0
    %v332 = vadd.f32 0.0, %v331
    %v333 = vpop.f32.mrb[0].mxu0
    %334 = vmatprep.mubr.f32.mxu0 0.0
    %335 = vmatmul.mubr.f32.gmra.mrb[0].mxu0 %v220
    %v336 = vpop.f32.mrb[0].mxu0
    %v337 = vadd.f32 0.0, %v336
    %v338 = vpop.f32.mrb[0].mxu0
    %339 = vmatprep.mubr.f32.mxu0 0.0
    %340 = vmatmul.mubr.f32.gmra.mrb[0].mxu0 %v222
    %v341 = vpop.f32.mrb[0].mxu0
    %v342 = vadd.f32 0.0, %v341
    %v343 = vpop.f32.mrb[0].mxu0
    %344 = vdwg.mxu0
    %v345 = vmul.f32 %v307, 0.35355338
    %v346 = vmul.f32 %v312, 0.35355338
    %v347 = vmul.f32 %v317, 0.35355338
    %v348 = vmul.f32 %v322, 0.35355338
    %v349 = vmul.f32 %v327, 0.35355338
    %v350 = vmul.f32 %v332, 0.35355338
    %v351 = vmul.f32 %v337, 0.35355338
    %v352 = vmul.f32 %v342, 0.35355338
    %v353 = vld [vmem:[#allocation8] sm:$0xff]
    %v354 = vld [vmem:[#allocation8 + $0x8] sm:$0xff]
    %v355 = vld [vmem:[#allocation8 + $0x10] sm:$0xff]
    %v356 = vld [vmem:[#allocation8 + $0x18] sm:$0xff]
    %v357 = vld [vmem:[#allocation8 + $0x20] sm:$0xff]
    %v358 = vld [vmem:[#allocation8 + $0x28] sm:$0xff]
    %v359 = vld [vmem:[#allocation8 + $0x30] sm:$0xff]
    %v360 = vld [vmem:[#allocation8 + $0x38] sm:$0xff]
    %v361 = vadd.f32 %v345, %v353
    %v362 = vadd.f32 %v346, %v354
    %v363 = vadd.f32 %v347, %v355
    %v364 = vadd.f32 %v348, %v356
    %v365 = vadd.f32 %v349, %v357
    %v366 = vadd.f32 %v350, %v358
    %v367 = vadd.f32 %v351, %v359
    %v368 = vadd.f32 %v352, %v360
    %v369 = vld [vmem:[#allocation10] sm:$0xff]
    %v370 = vld [vmem:[#allocation10 + $0x8] sm:$0xff]
    %v371 = vld [vmem:[#allocation10 + $0x10] sm:$0xff]
    %v372 = vld [vmem:[#allocation10 + $0x18] sm:$0xff]
    %v373 = vld [vmem:[#allocation10 + $0x20] sm:$0xff]
    %v374 = vld [vmem:[#allocation10 + $0x28] sm:$0xff]
    %v375 = vld [vmem:[#allocation10 + $0x30] sm:$0xff]
    %v376 = vld [vmem:[#allocation10 + $0x38] sm:$0xff]
    %vm377 = vcmp.ne.f32.partialorder %v369, 0.0
    %vm378 = vcmp.ne.f32.partialorder %v370, 0.0
    %vm379 = vcmp.ne.f32.partialorder %v371, 0.0
    %vm380 = vcmp.ne.f32.partialorder %v372, 0.0
    %vm381 = vcmp.ne.f32.partialorder %v373, 0.0
    %vm382 = vcmp.ne.f32.partialorder %v374, 0.0
    %vm383 = vcmp.ne.f32.partialorder %v375, 0.0
    %vm384 = vcmp.ne.f32.partialorder %v376, 0.0
    %v385 = vsel %vm377, 0.0001, %v361
    %v386 = vsel %vm378, 0.0001, %v362
    %v387 = vsel %vm379, 0.0001, %v363
    %v388 = vsel %vm380, 0.0001, %v364
    %v389 = vsel %vm381, 0.0001, %v365
    %v390 = vsel %vm382, 0.0001, %v366
    %v391 = vsel %vm383, 0.0001, %v367
    %v392 = vsel %vm384, 0.0001, %v368
    %vm393 = vcmask 523264
    %v394 = vsel %vm393, %v385, -inf
    %395 = vmax.xlane.f32.xlu0 %v394
    %v396 = vpop.xlane.xlu0 %395
    %v397 = vsel %vm393, %v386, -inf
    %398 = vmax.xlane.f32.xlu0 %v397
    %v399 = vpop.xlane.xlu0 %398
    %v400 = vsel %vm393, %v387, -inf
    %401 = vmax.xlane.f32.xlu0 %v400
    %v402 = vpop.xlane.xlu0 %401
    %v403 = vsel %vm393, %v388, -inf
    %404 = vmax.xlane.f32.xlu0 %v403
    %v405 = vpop.xlane.xlu0 %404
    %v406 = vsel %vm393, %v389, -inf
    %407 = vmax.xlane.f32.xlu0 %v406
    %v408 = vpop.xlane.xlu0 %407
    %v409 = vsel %vm393, %v390, -inf
    %410 = vmax.xlane.f32.xlu0 %v409
    %v411 = vpop.xlane.xlu0 %410
    %v412 = vsel %vm393, %v391, -inf
    %413 = vmax.xlane.f32.xlu0 %v412
    %v414 = vpop.xlane.xlu0 %413
    %v415 = vsel %vm393, %v392, -inf
    %416 = vmax.xlane.f32.xlu0 %v415
    %v417 = vpop.xlane.xlu0 %416
    %v418 = vsub.f32 %v385, %v396
    %v419 = vsub.f32 %v386, %v399
    %v420 = vsub.f32 %v387, %v402
    %v421 = vsub.f32 %v388, %v405
    %v422 = vsub.f32 %v389, %v408
    %v423 = vsub.f32 %v390, %v411
    %v424 = vsub.f32 %v391, %v414
    %v425 = vsub.f32 %v392, %v417
    %v426 = vmul.f32 %v418, 1.442695
    %v427 = vpow.pop %v426
    %v428 = vmul.f32 %v419, 1.442695
    %v429 = vpow.pop %v428
    %v430 = vmul.f32 %v420, 1.442695
    %v431 = vpow.pop %v430
    %v432 = vmul.f32 %v421, 1.442695
    %v433 = vpow.pop %v432
    %v434 = vmul.f32 %v422, 1.442695
    %v435 = vpow.pop %v434
    %v436 = vmul.f32 %v423, 1.442695
    %v437 = vpow.pop %v436
    %v438 = vmul.f32 %v424, 1.442695
    %v439 = vpow.pop %v438
    %v440 = vmul.f32 %v425, 1.442695
    %v441 = vpow.pop %v440
    %v442 = vsel %vm393, %v427, 0.0
    %443 = vadd.xlane.f32.xlu0 %v442
    %v444 = vpop.xlane.xlu0 %443
    %v445 = vsel %vm393, %v429, 0.0
    %446 = vadd.xlane.f32.xlu0 %v445
    %v447 = vpop.xlane.xlu0 %446
    %v448 = vsel %vm393, %v431, 0.0
    %449 = vadd.xlane.f32.xlu0 %v448
    %v450 = vpop.xlane.xlu0 %449
    %v451 = vsel %vm393, %v433, 0.0
    %452 = vadd.xlane.f32.xlu0 %v451
    %v453 = vpop.xlane.xlu0 %452
    %v454 = vsel %vm393, %v435, 0.0
    %455 = vadd.xlane.f32.xlu0 %v454
    %v456 = vpop.xlane.xlu0 %455
    %v457 = vsel %vm393, %v437, 0.0
    %458 = vadd.xlane.f32.xlu0 %v457
    %v459 = vpop.xlane.xlu0 %458
    %v460 = vsel %vm393, %v439, 0.0
    %461 = vadd.xlane.f32.xlu0 %v460
    %v462 = vpop.xlane.xlu0 %461
    %v463 = vsel %vm393, %v441, 0.0
    %464 = vadd.xlane.f32.xlu0 %v463
    %v465 = vpop.xlane.xlu0 %464
    %v466 = vrcp.pop %v444
    %v467 = vrcp.pop %v447
    %v468 = vrcp.pop %v450
    %v469 = vrcp.pop %v453
    %v470 = vrcp.pop %v456
    %v471 = vrcp.pop %v459
    %v472 = vrcp.pop %v462
    %v473 = vrcp.pop %v465
    %v474 = vmul.f32 %v427, %v466
    %v475 = vmul.f32 %v429, %v467
    %v476 = vmul.f32 %v431, %v468
    %v477 = vmul.f32 %v433, %v469
    %v478 = vmul.f32 %v435, %v470
    %v479 = vmul.f32 %v437, %v471
    %v480 = vmul.f32 %v439, %v472
    %v481 = vmul.f32 %v441, %v473
    %482 = vrot.lane.b32.xlu0 %v169, 64
    %v483 = vpop.permute.xlu0 %482
    %484 = vrot.lane.b32.xlu0 %v179, 64
    %v485 = vpop.permute.xlu0 %484
    %486 = vrot.lane.b32.xlu0 %v181, 64
    %v487 = vpop.permute.xlu0 %486
    %488 = vrot.lane.b32.xlu0 %v183, 64
    %v489 = vpop.permute.xlu0 %488
    %490 = vrot.lane.b32.xlu0 %v174, 64
    %v491 = vpop.permute.xlu0 %490
    %492 = vrot.lane.b32.xlu0 %v186, 64
    %v493 = vpop.permute.xlu0 %492
    %494 = vrot.lane.b32.xlu0 %v188, 64
    %v495 = vpop.permute.xlu0 %494
    %496 = vrot.lane.b32.xlu0 %v190, 64
    %v497 = vpop.permute.xlu0 %496
    %v507 = vsel %vm393, %v474, 0
    %v510 = vsel %vm393, %v475, 0
    %v513 = vsel %vm393, %v476, 0
    %v516 = vsel %vm393, %v477, 0
    %v519 = vsel %vm393, %v478, 0
    %v522 = vsel %vm393, %v479, 0
    %v525 = vsel %vm393, %v480, 0
    %v528 = vsel %vm393, %v481, 0
    %530 = vmatprep.subr.mxu0 0.0
    %531 = vmatpush1.msra.mxu0 %v483
    %532 = vmatprep.subr.mxu0 0.0
    %533 = vmatpush1.msra.mxu0 %v485
    %534 = vmatprep.subr.mxu0 0.0
    %535 = vmatpush1.msra.mxu0 %v487
    %536 = vmatprep.subr.mxu0 0.0
    %537 = vmatpush1.msra.mxu0 %v489
    %538 = vmatprep.subr.mxu0 0.0
    %539 = vmatpush1.msra.mxu0 %v491
    %540 = vmatprep.subr.mxu0 0.0
    %541 = vmatpush1.msra.mxu0 %v493
    %542 = vmatprep.subr.mxu0 0.0
    %543 = vmatpush1.msra.mxu0 %v495
    %544 = vmatprep.subr.mxu0 0.0
    %545 = vmatpush1.msra.mxu0 %v497
    %546 = vmatprep.subr.mxu0 0.0
    %547 = vmatpush1.msra.mxu0 0.0
    %548 = vmatprep.subr.mxu0 0.0
    %549 = vmatpush1.msra.mxu0 0.0
    %550 = vmatprep.subr.mxu0 0.0
    %551 = vmatpush1.msra.mxu0 0.0
    %552 = vmatprep.subr.mxu0 0.0
    %553 = vmatpush1.msra.mxu0 0.0
    %554 = vmatprep.subr.mxu0 0.0
    %555 = vmatpush1.msra.mxu0 0.0
    %556 = vmatprep.subr.mxu0 0.0
    %557 = vmatpush1.msra.mxu0 0.0
    %558 = vmatprep.subr.mxu0 0.0
    %559 = vmatpush1.msra.mxu0 0.0
    %560 = vmatprep.subr.mxu0 0.0
    %561 = vmatpush1.msra.mxu0 0.0
    %562 = vmatprep.subr.mxu0 0.0
    %563 = vmatpush1.msra.mxu0 0.0
    %564 = vmatprep.subr.mxu0 0.0
    %565 = vmatpush1.msra.mxu0 0.0
    %566 = vmatprep.subr.mxu0 0.0
    %567 = vmatpush1.msra.mxu0 0.0
    %568 = vmatprep.subr.mxu0 0.0
    %569 = vmatpush1.msra.mxu0 0.0
    %570 = vmatprep.subr.mxu0 0.0
    %571 = vmatpush1.msra.mxu0 0.0
    %572 = vmatprep.subr.mxu0 0.0
    %573 = vmatpush1.msra.mxu0 0.0
    %574 = vmatprep.subr.mxu0 0.0
    %575 = vmatpush1.msra.mxu0 0.0
    %576 = vmatprep.subr.mxu0 0.0
    %577 = vmatpush1.msra.mxu0 0.0
    %578 = vmatprep.subr.mxu0 0.0
    %579 = vmatpush1.msra.mxu0 0.0
    %580 = vmatprep.subr.mxu0 0.0
    %581 = vmatpush1.msra.mxu0 0.0
    %582 = vmatprep.subr.mxu0 0.0
    %583 = vmatpush1.msra.mxu0 0.0
    %584 = vmatprep.subr.mxu0 0.0
    %585 = vmatpush1.msra.mxu0 0.0
    %586 = vmatprep.subr.mxu0 0.0
    %587 = vmatpush1.msra.mxu0 0.0
    %588 = vmatprep.subr.mxu0 0.0
    %589 = vmatpush1.msra.mxu0 0.0
    %590 = vmatprep.subr.mxu0 0.0
    %591 = vmatpush1.msra.mxu0 0.0
    %592 = vmatprep.subr.mxu0 0.0
    %593 = vmatpush1.msra.mxu0 0.0
    %594 = vmatprep.mubr.f32.mxu0 0.0
    %595 = vmatmul.mubr.f32.gmra.mrb[0].mxu0 %v507
    %v596 = vpop.f32.mrb[0].mxu0
    %v597 = vadd.f32 0.0, %v596
    %v598 = vpop.f32.mrb[0].mxu0
    %599 = vmatprep.mubr.f32.mxu0 0.0
    %600 = vmatmul.mubr.f32.gmra.mrb[0].mxu0 %v510
    %v601 = vpop.f32.mrb[0].mxu0
    %v602 = vadd.f32 0.0, %v601
    %v603 = vpop.f32.mrb[0].mxu0
    %604 = vmatprep.mubr.f32.mxu0 0.0
    %605 = vmatmul.mubr.f32.gmra.mrb[0].mxu0 %v513
    %v606 = vpop.f32.mrb[0].mxu0
    %v607 = vadd.f32 0.0, %v606
    %v608 = vpop.f32.mrb[0].mxu0
    %609 = vmatprep.mubr.f32.mxu0 0.0
    %610 = vmatmul.mubr.f32.gmra.mrb[0].mxu0 %v516
    %v611 = vpop.f32.mrb[0].mxu0
    %v612 = vadd.f32 0.0, %v611
    %v613 = vpop.f32.mrb[0].mxu0
    %614 = vmatprep.mubr.f32.mxu0 0.0
    %615 = vmatmul.mubr.f32.gmra.mrb[0].mxu0 %v519
    %v616 = vpop.f32.mrb[0].mxu0
    %v617 = vadd.f32 0.0, %v616
    %v618 = vpop.f32.mrb[0].mxu0
    %619 = vmatprep.mubr.f32.mxu0 0.0
    %620 = vmatmul.mubr.f32.gmra.mrb[0].mxu0 %v522
    %v621 = vpop.f32.mrb[0].mxu0
    %v622 = vadd.f32 0.0, %v621
    %v623 = vpop.f32.mrb[0].mxu0
    %624 = vmatprep.mubr.f32.mxu0 0.0
    %625 = vmatmul.mubr.f32.gmra.mrb[0].mxu0 %v525
    %v626 = vpop.f32.mrb[0].mxu0
    %v627 = vadd.f32 0.0, %v626
    %v628 = vpop.f32.mrb[0].mxu0
    %629 = vmatprep.mubr.f32.mxu0 0.0
    %630 = vmatmul.mubr.f32.gmra.mrb[0].mxu0 %v528
    %v631 = vpop.f32.mrb[0].mxu0
    %v632 = vadd.f32 0.0, %v631
    %v633 = vpop.f32.mrb[0].mxu0
    %634 = vdwg.mxu0
    %636 = vrot.lane.b32.xlu0 %v602, 8
    %v637 = vpop.permute.xlu0 %636
    %640 = vrot.lane.b32.xlu0 %v607, 16
    %v641 = vpop.permute.xlu0 %640
    %644 = vrot.lane.b32.xlu0 %v612, 24
    %v645 = vpop.permute.xlu0 %644
    %v647 = vsel %vm207, %v597, %v637
    %vm648 = vcmask 130048
    %v649 = vsel %vm648, %v647, %v641
    %vm650 = vcmask 195584
    %v651 = vsel %vm650, %v649, %v645
    %653 = vrot.lane.b32.xlu0 %v622, 8
    %v654 = vpop.permute.xlu0 %653
    %657 = vrot.lane.b32.xlu0 %v627, 16
    %v658 = vpop.permute.xlu0 %657
    %661 = vrot.lane.b32.xlu0 %v632, 24
    %v662 = vpop.permute.xlu0 %661
    %v664 = vsel %vm207, %v617, %v654
    %v665 = vsel %vm648, %v664, %v658
    %v666 = vsel %vm650, %v665, %v662
    %v667 = vld [vmem:[#allocation7] sm:$0xff]
    %v668 = vld [vmem:[#allocation7 + $0x8] sm:$0xff]
    %v669 = vld [vmem:[#allocation7 + $0x10] sm:$0xff]
    %v670 = vld [vmem:[#allocation7 + $0x18] sm:$0xff]
    %v672 = vsel %vm95, %v651, 0
    %v675 = vsel %vm95, %v666, 0
    %677 = vmatprep.subr.mxu0 0.0
    %678 = vmatpush1.msra.mxu0 %v667
    %679 = vmatprep.subr.mxu0 0.0
    %680 = vmatpush1.msra.mxu0 %v668
    %681 = vmatprep.subr.mxu0 0.0
    %682 = vmatpush1.msra.mxu0 %v669
    %683 = vmatprep.subr.mxu0 0.0
    %684 = vmatpush1.msra.mxu0 %v670
    %685 = vmatprep.subr.mxu0 0.0
    %686 = vmatpush1.msra.mxu0 0.0
    %687 = vmatprep.subr.mxu0 0.0
    %688 = vmatpush1.msra.mxu0 0.0
    %689 = vmatprep.subr.mxu0 0.0
    %690 = vmatpush1.msra.mxu0 0.0
    %691 = vmatprep.subr.mxu0 0.0
    %692 = vmatpush1.msra.mxu0 0.0
    %693 = vmatprep.subr.mxu0 0.0
    %694 = vmatpush1.msra.mxu0 0.0
    %695 = vmatprep.subr.mxu0 0.0
    %696 = vmatpush1.msra.mxu0 0.0
    %697 = vmatprep.subr.mxu0 0.0
    %698 = vmatpush1.msra.mxu0 0.0
    %699 = vmatprep.subr.mxu0 0.0
    %700 = vmatpush1.msra.mxu0 0.0
    %701 = vmatprep.subr.mxu0 0.0
    %702 = vmatpush1.msra.mxu0 0.0
    %703 = vmatprep.subr.mxu0 0.0
    %704 = vmatpush1.msra.mxu0 0.0
    %705 = vmatprep.subr.mxu0 0.0
    %706 = vmatpush1.msra.mxu0 0.0
    %707 = vmatprep.subr.mxu0 0.0
    %708 = vmatpush1.msra.mxu0 0.0
    %709 = vmatprep.subr.mxu0 0.0
    %710 = vmatpush1.msra.mxu0 0.0
    %711 = vmatprep.subr.mxu0 0.0
    %712 = vmatpush1.msra.mxu0 0.0
    %713 = vmatprep.subr.mxu0 0.0
    %714 = vmatpush1.msra.mxu0 0.0
    %715 = vmatprep.subr.mxu0 0.0
    %716 = vmatpush1.msra.mxu0 0.0
    %717 = vmatprep.subr.mxu0 0.0
    %718 = vmatpush1.msra.mxu0 0.0
    %719 = vmatprep.subr.mxu0 0.0
    %720 = vmatpush1.msra.mxu0 0.0
    %721 = vmatprep.subr.mxu0 0.0
    %722 = vmatpush1.msra.mxu0 0.0
    %723 = vmatprep.subr.mxu0 0.0
    %724 = vmatpush1.msra.mxu0 0.0
    %725 = vmatprep.subr.mxu0 0.0
    %726 = vmatpush1.msra.mxu0 0.0
    %727 = vmatprep.subr.mxu0 0.0
    %728 = vmatpush1.msra.mxu0 0.0
    %729 = vmatprep.subr.mxu0 0.0
    %730 = vmatpush1.msra.mxu0 0.0
    %731 = vmatprep.subr.mxu0 0.0
    %732 = vmatpush1.msra.mxu0 0.0
    %733 = vmatprep.subr.mxu0 0.0
    %734 = vmatpush1.msra.mxu0 0.0
    %735 = vmatprep.subr.mxu0 0.0
    %736 = vmatpush1.msra.mxu0 0.0
    %737 = vmatprep.subr.mxu0 0.0
    %738 = vmatpush1.msra.mxu0 0.0
    %739 = vmatprep.subr.mxu0 0.0
    %740 = vmatpush1.msra.mxu0 0.0
    %741 = vmatprep.mubr.f32.mxu0 0.0
    %742 = vmatmul.mubr.f32.gmra.mrb[0].mxu0 %v672
    %v743 = vpop.f32.mrb[0].mxu0
    %v744 = vadd.f32 0.0, %v743
    %v745 = vpop.f32.mrb[0].mxu0
    %746 = vmatprep.mubr.f32.mxu0 0.0
    %747 = vmatmul.mubr.f32.gmra.mrb[0].mxu0 %v675
    %v748 = vpop.f32.mrb[0].mxu0
    %v749 = vadd.f32 0.0, %v748
    %v750 = vpop.f32.mrb[0].mxu0
    %751 = vdwg.mxu0
    %752 = vst.msk [vmem:[#allocation11] sm:$0xff] %vm95, %v744
    %753 = vst.msk [vmem:[#allocation11 + $0x8] sm:$0xff] %vm95, %v749
    // Predicated region
    $region42: #{tpu_custom_call.1} parent=1 // pred_check
      _
    $region43: #{tpu_custom_call.1} parent=1 // pred_check_branch
      %755 = sbr.rel (0) target = $region45
    $region44: #{tpu_custom_call.1} parent=1 // pred_region
      %s757 = ssub.s32 256, 256
      %758 = vsyncadd [#allocation4], %s757
      %s759 = sshll.u32 [#allocation11], 4
      %s760 = int_to_ptr.vmem [resolvable:$true] %s759
      %765 = dma.vmem_to_hbm [thread:$0]  %s760, 256, %s5, [#allocation4], 128, 128, 8
    $region45: #{tpu_custom_call.1} parent=1 // pred_fallthru
      _
    // Predicated region
    $region46: #{tpu_custom_call.1} parent=1 // pred_check
      _
    $region47: #{tpu_custom_call.1} parent=1 // pred_check_branch
      %767 = sbr.rel (0) target = $region49
    $region48: #{tpu_custom_call.1} parent=1 // pred_region
      %768 = dma.done [#allocation4], 256
    $region49: #{tpu_custom_call.1} parent=1 // pred_fallthru
      _
    %769 = vsyncpa [#allocation3], 1
    %770 = vsyncpa [#allocation6], 1
    %771 = vsyncpa [#allocation9], 1
    %772 = vsyncpa [#allocation4], 1

</llo_original>
